<compile_context>
chip_gen: v7x
topology: tpu7x:2x2x1
jax: 0.10.0
libtpu: 0.0.40
codegen_flags: <defaults>
</compile_context>

<pallas_src>
from functools import partial

import numpy as np
import jax
import jax.numpy as jnp
from jax.experimental import pallas as pl
from jax.experimental.pallas import tpu as pltpu


def _copy_kernel(x_ref, o_ref):
    # Pure elementwise passthrough (VPU copy of one vreg).
    o_ref[...] = x_ref[...]


@partial(jax.jit, donate_argnums=0)
def _noop_passthrough(x: jax.Array) -> jax.Array:
    """In-place identity through a Pallas kernel.

    x: (R, C) f32 with R % 8 == 0, C % 128 == 0 (meets the (8,128) f32 tiling
    constraint).  No grid: the whole (tiny) array lives in VMEM for the single
    kernel invocation, and the output aliases the input buffer.
    """
    return pl.pallas_call(
        _copy_kernel,
        out_shape=jax.ShapeDtypeStruct(x.shape, x.dtype),
        in_specs=[pl.BlockSpec(memory_space=pltpu.MemorySpace.VMEM)],
        out_specs=pl.BlockSpec(memory_space=pltpu.MemorySpace.VMEM),
        input_output_aliases={0: 0},
    )(x)


class BaseModel:
    """JAX/Pallas mirror of the PyTorch BaseModel.

    __init__ stores opaque config (args, clip_processor); no parameters.
    forward() reproduces the reference semantics exactly: it is a no-op and
    returns None.  No device work, no host sync, no kernel dispatch.
    """

    def __init__(self, args=None, clip_processor=None):
        self.args = args
        self.clip_processor = clip_processor

    def forward(self):
        # Reference forward() body is `pass` — nothing to compute.
        return None


if __name__ == "__main__":
    # 1) Model path: must match reference semantics (no-op, returns None).
    model = BaseModel(args=None, clip_processor=None)
    result = model.forward()
    assert result is None

    # 2) Smoke-test the Pallas identity kernel once (outside the model path).
    #    Kept at one vreg (8, 128) f32 per the review: dispatch-latency bound
    #    by design, minimal test wall time, safe on all TPU generations.
    key = jax.random.PRNGKey(0)
    dummy = jax.random.normal(key, (8, 128), dtype=jnp.float32)
    expected = np.asarray(dummy)            # host copy BEFORE donation
    out = _noop_passthrough(dummy)          # `dummy` buffer is donated/aliased
    jax.block_until_ready(out)
    assert np.array_equal(np.asarray(out), expected)

    print("KERNEL_OK")
</pallas_src>

<mosaic_0001>
module attributes {stable_mosaic.version = 11 : i64} {
  func.func @_copy_kernel(%arg0: memref<8x128xf32, #tpu.memory_space<vmem>>, %arg1: memref<8x128xf32, #tpu.memory_space<vmem>>) attributes {dimension_semantics = [], scalar_prefetch = 0 : i64, scratch_operands = 0 : i64, tpu.core_type = #tpu.core_type<tc>} {
    %c0 = arith.constant 0 : index
    %c0_0 = arith.constant 0 : index
    %0 = vector.load %arg0[%c0, %c0_0] : memref<8x128xf32, #tpu.memory_space<vmem>>, vector<8x128xf32>
    %c0_1 = arith.constant 0 : index
    %c0_2 = arith.constant 0 : index
    %1 = vector.load %arg1[%c0_1, %c0_2] : memref<8x128xf32, #tpu.memory_space<vmem>>, vector<8x128xf32>
    tpu.vector_store %arg1[%c0_1, %c0_2], %0 {strides = array<i32>} : memref<8x128xf32, #tpu.memory_space<vmem>>, vector<8x128xf32>,
    return
  }
}

</mosaic_0001>

<llo_original>
// kernel: _noop_passthrough.1
$region0: #{_noop_passthrough.1}
  #allocation0 [shape = 'u32[]', space=smem, size = 0x4, offset = 0x4, fixed_abs, tag = 'smem constant byte address 0x4 - core index']
  #allocation1 [shape = 'u32[144,128]{1,0:T(1,128)}', space=vmem, size = 0x12000, scoped, tag = 'internal scratch']
  %s0 = inlined_call_operand.hbm [shape: f32[8,128], index: 0, kind: input, shape index: {}, may-alias: {0,1}]
  %s1 = inlined_call_operand.hbm [shape: f32[8,128], index: 1, kind: output, shape index: {}, may-alias: {0,1}]
  %s2 = sld [smem:[#allocation0]]
  $region18: #{_noop_passthrough.1} parent=0
    _
  %s4 = ssub.s32 1, %s2
  %s5 = scalar_select 0, %s4, %s2
  $region1: #{_noop_passthrough.1} parent=0
    #allocation2 [shape = 'u8[4096]{0}', space=vmem, size = 0x1000, scoped, tag = 'input window, operand 0, single buffered']
    #allocation3 [shape = 's32[1]{0}', space=sflag, size = 0x4, scoped, tag = 'scoped memory for _noop_passthrough.1']
    #allocation4 [shape = 's32[1]{0}', space=sflag, size = 0x4, scoped, tag = 'scoped memory for _noop_passthrough.1']
    #allocation5 [shape = 'u8[4096]{0}', space=vmem, size = 0x1000, scoped, tag = 'output window, operand 0, single buffered']
    %6 = vsyncpa [#allocation3], 0
    %7 = vsyncpa [#allocation4], 0
    // Predicated region
    $region2: #{_noop_passthrough.1} parent=1 // pred_check
      _
    $region3: #{_noop_passthrough.1} parent=1 // pred_check_branch
      %9 = sbr.rel (0) target = $region5
    $region4: #{_noop_passthrough.1} parent=1 // pred_region
      %s11 = ssub.s32 128, 128
      %12 = vsyncadd [#allocation3], %s11
      %s14 = sshll.u32 [#allocation2], 4
      %s15 = int_to_ptr.vmem [resolvable:$true] %s14
      %17 = dma.hbm_to_vmem [thread:$0]  %s0, 128, %s15, [#allocation3]
    $region5: #{_noop_passthrough.1} parent=1 // pred_fallthru
      _
    // Predicated region
    $region6: #{_noop_passthrough.1} parent=1 // pred_check
      _
    $region7: #{_noop_passthrough.1} parent=1 // pred_check_branch
      %19 = sbr.rel (0) target = $region9
    $region8: #{_noop_passthrough.1} parent=1 // pred_region
      %20 = dma.done [#allocation3], 128
    $region9: #{_noop_passthrough.1} parent=1 // pred_fallthru
      _
    %v21 = vld [vmem:[#allocation2] sm:$0xff]
    %22 = vst [vmem:[#allocation5] sm:$0xff] %v21
    // Predicated region
    $region10: #{_noop_passthrough.1} parent=1 // pred_check
      _
    $region11: #{_noop_passthrough.1} parent=1 // pred_check_branch
      %24 = sbr.rel (0) target = $region13
    $region12: #{_noop_passthrough.1} parent=1 // pred_region
      %s26 = ssub.s32 128, 128
      %27 = vsyncadd [#allocation4], %s26
      %s29 = sshll.u32 [#allocation5], 4
      %s30 = int_to_ptr.vmem [resolvable:$true] %s29
      %32 = dma.vmem_to_hbm [thread:$0]  %s30, 128, %s1, [#allocation4]
    $region13: #{_noop_passthrough.1} parent=1 // pred_fallthru
      _
    // Predicated region
    $region14: #{_noop_passthrough.1} parent=1 // pred_check
      _
    $region15: #{_noop_passthrough.1} parent=1 // pred_check_branch
      %34 = sbr.rel (0) target = $region17
    $region16: #{_noop_passthrough.1} parent=1 // pred_region
      %35 = dma.done [#allocation4], 128
    $region17: #{_noop_passthrough.1} parent=1 // pred_fallthru
      _
    %36 = vsyncpa [#allocation3], 1
    %37 = vsyncpa [#allocation4], 1

</llo_original>
